<compile_context>
chip_gen: v6e
topology: v6e:2x2x1
jax: 0.10.0
libtpu: 0.0.40
codegen_flags: <defaults>
</compile_context>

<pallas_src>
import functools

import jax
import jax.numpy as jnp
from jax import lax
from jax.experimental import pallas as pl
from jax.experimental.pallas import tpu as pltpu


# ----------------------------------------------------------------------------
# Pallas kernel: all view pairs, grid over pairs
# ----------------------------------------------------------------------------
def _gc_pairs_kernel(sizes_ref, x_ref, out_ref, *, inv_t):
    # sizes_ref: SMEM (2*P,) int32    -- (ni, nj) per pair, flattened (prefetch)
    # x_ref:     VMEM (1, N, Dp)      -- zero-padded concatenated centers
    # out_ref:   VMEM (1, 8, 128)     -- pair loss broadcast over an aligned tile
    p = pl.program_id(0)
    ni = sizes_ref[2 * p]
    nj = sizes_ref[2 * p + 1]
    n_tot = ni + nj
    m = jnp.minimum(ni, nj)

    x = x_ref[0]                       # (N, Dp), native dtype
    n = x.shape[0]

    # Gram matrix on the MXU; contraction on the last dim of both operands,
    # so no explicit transpose of x goes through the XLU.
    gram = lax.dot_general(x, x, (((1,), (1,)), ((), ())),
                           preferred_element_type=jnp.float32)

    row = lax.broadcasted_iota(jnp.int32, (n, n), 0)
    col = lax.broadcasted_iota(jnp.int32, (n, n), 1)
    row1 = lax.broadcasted_iota(jnp.int32, (n, 1), 0)

    # In-kernel positive mask [[eye(ni), R], [R.T, eye(nj)]] with the synthetic
    # identity relation R (ball k <-> ball k of the other view).
    # TODO(synk): regenerate from the real sample-membership relation when
    # relation_of_views_gblists_tensor semantics are available; the O(N)-log
    # reduction below assumes <=1 off-diagonal positive per row (true for R=I).
    diag_f = ((row == col) & (row < n_tot)).astype(jnp.float32)
    cross_f = (((col == row + ni) & (row < m))
               | ((row == col + ni) & (col < m))).astype(jnp.float32)
    pos_f = diag_f + cross_f                          # disjoint masks
    vcol_f = (col < n_tot).astype(jnp.float32)        # exclude padded columns

    # Squared norms straight off the Gram diagonal (no extra x*x pass, no
    # (N,1)->(1,N) transpose: column scale comes from an axis-0 reduce).
    sq_row = jnp.sum(diag_f * gram, axis=1, keepdims=True)   # (N, 1)
    sq_col = jnp.sum(diag_f * gram, axis=0, keepdims=True)   # (1, N)
    inv_row = lax.rsqrt(sq_row + 1e-12)                      # EUP
    inv_col = lax.rsqrt(sq_col + 1e-12)
    # scaled = cosine_sim / t  (zero-padded rows/cols give gram == 0 -> 0)
    scaled = gram * (inv_row * inv_t) * inv_col

    # One full-matrix exp; everything else reuses it.
    e_full = jnp.exp(scaled)
    # sum_j exp(sim_neg[i, j]) over valid columns; positive entries contribute
    # exp(0) == 1 (kept, exactly as in the PyTorch reference).
    e_neg = jnp.sum(vcol_f * (e_full + pos_f * (1.0 - e_full)),
                    axis=1, keepdims=True)            # (N, 1)

    # Extract the <=2 positive entries per row with masked row reductions.
    s_diag = jnp.sum(diag_f * scaled, axis=1, keepdims=True)
    e_diag = jnp.sum(diag_f * e_full, axis=1, keepdims=True)
    s_cross = jnp.sum(cross_f * scaled, axis=1, keepdims=True)
    e_cross = jnp.sum(cross_f * e_full, axis=1, keepdims=True)

    # "Row has a diagonal / cross positive" flags from 1-column iotas (no
    # full-matrix reductions needed).
    has_diag = (row1 < n_tot).astype(jnp.float32)
    has_cross = ((row1 < m) | ((row1 >= ni) & (row1 < ni + m))).astype(jnp.float32)

    # Term at a positive entry (i, j): log(exp(s_ij) + e_neg_i) - s_ij.
    # Entries with pos == 0 contribute exactly 0 in the reference, so only the
    # O(N) positive entries are evaluated (<= 2N logs total).
    numer_rows = (has_diag * (jnp.log(e_diag + e_neg) - s_diag)
                  + has_cross * (jnp.log(e_cross + e_neg) - s_cross))
    numer = jnp.sum(numer_rows)
    # pos_mask.sum() == n_tot + 2*min(ni, nj) for the identity relation.
    denom = (n_tot + 2 * m).astype(jnp.float32)

    loss = numer / denom
    out_ref[...] = jnp.full(out_ref.shape, loss, dtype=out_ref.dtype)


def gc_pair_losses(x_stacked, sizes_flat, temperature=1.0):
    """x_stacked: (P, N, Dp) padded centers; sizes_flat: (2*P,) int32.

    Returns a (P,) float32 vector of per-pair losses from one pallas_call."""
    p_pairs, n_pad, d_pad = x_stacked.shape
    kernel = functools.partial(_gc_pairs_kernel, inv_t=1.0 / float(temperature))
    out = pl.pallas_call(
        kernel,
        out_shape=jax.ShapeDtypeStruct((p_pairs, 8, 128), jnp.float32),
        grid_spec=pltpu.PrefetchScalarGridSpec(
            num_scalar_prefetch=1,
            grid=(p_pairs,),
            in_specs=[pl.BlockSpec((1, n_pad, d_pad), lambda p, sz: (p, 0, 0))],
            out_specs=pl.BlockSpec((1, 8, 128), lambda p, sz: (p, 0, 0)),
        ),
        compiler_params=pltpu.CompilerParams(
            dimension_semantics=("parallel",),
        ),
    )(sizes_flat, x_stacked)
    return out[:, 0, 0]


# ----------------------------------------------------------------------------
# Wrapper: pad + stack all pairs, one kernel call (matches PyTorch forward)
# ----------------------------------------------------------------------------
def _round_up(v, mult):
    return ((v + mult - 1) // mult) * mult


def multiview_gc_loss(centers_list, temperature=1.0):
    """centers_list: list of (n_v, D) arrays (one per view). Returns scalar loss."""
    num_views = len(centers_list)
    pairs = [(i, j) for i in range(num_views) for j in range(i + 1, num_views)]
    d = centers_list[0].shape[1]
    d_pad = _round_up(max(d, 128), 128)          # lane-dense last dim
    n_pad = _round_up(max(centers_list[i].shape[0] + centers_list[j].shape[0]
                          for i, j in pairs), 8)

    xs, sizes = [], []
    for i, j in pairs:
        ci, cj = centers_list[i], centers_list[j]
        ni, nj = ci.shape[0], cj.shape[0]
        xcat = jnp.concatenate([ci, cj], axis=0)
        xcat = jnp.pad(xcat, ((0, n_pad - (ni + nj)), (0, d_pad - d)))
        xs.append(xcat)
        sizes.append((ni, nj))
    x_stacked = jnp.stack(xs, axis=0)            # (P, n_pad, d_pad), native dtype
    sizes_flat = jnp.asarray(sizes, dtype=jnp.int32).reshape(-1)   # (2*P,)

    pair_losses = gc_pair_losses(x_stacked, sizes_flat, temperature)
    return jnp.sum(pair_losses) / (num_views * (num_views - 1) / 2)


# ----------------------------------------------------------------------------
# Pure-JAX reference (mirrors the PyTorch module) for the cross-check
# ----------------------------------------------------------------------------
def relation_of_views(ni, nj):
    # TODO(synk): synthetic identity stand-in for relation_of_views_gblists_tensor
    # (the real relation depends on granular-ball sample membership).
    m = min(ni, nj)
    rel = jnp.zeros((ni, nj), dtype=jnp.float32)
    return rel.at[jnp.arange(m), jnp.arange(m)].set(1.0)


def merge_masks(a, b, c, d):
    top = jnp.concatenate([a, b], axis=1)
    bot = jnp.concatenate([c, d], axis=1)
    return jnp.concatenate([top, bot], axis=0)


def _pair_loss_ref(x, pos_mask, t):
    x = x.astype(jnp.float32)
    norm = jnp.linalg.norm(x, axis=1, keepdims=True)
    sim = (x @ x.T) / (norm @ norm.T + 1e-12)
    neg = 1.0 - pos_mask
    sim_pos = pos_mask * sim / t
    sim_neg = neg * sim / t
    exp_neg = jnp.sum(jnp.exp(sim_neg), axis=1, keepdims=True)
    expsum = jnp.exp(sim_pos) + exp_neg
    return jnp.sum(-(sim_pos - jnp.log(expsum) * pos_mask)) / jnp.sum(pos_mask)


if __name__ == "__main__":
    key = jax.random.PRNGKey(0)
    dim = 32
    temperature = 1.0
    balls_per_view = (8, 6, 8)     # unequal sizes also exercise the padding path
    num_views = len(balls_per_view)

    keys = jax.random.split(key, num_views)
    centers = [jax.random.normal(k, (nb, dim), dtype=jnp.float32)
               for k, nb in zip(keys, balls_per_view)]

    loss = jax.block_until_ready(multiview_gc_loss(centers, temperature))

    # Cross-check against the pure-JAX reference (per-pair, unpadded).
    ref = jnp.float32(0.0)
    for i in range(num_views):
        for j in range(i + 1, num_views):
            ni, nj = centers[i].shape[0], centers[j].shape[0]
            rel = relation_of_views(ni, nj)
            pm = merge_masks(jnp.eye(ni), rel, rel.T, jnp.eye(nj))
            xcat = jnp.concatenate([centers[i], centers[j]], axis=0)
            ref = ref + _pair_loss_ref(xcat, pm, temperature)
    ref = ref / (num_views * (num_views - 1) / 2)

    assert jnp.allclose(loss, ref, rtol=1e-4, atol=1e-4), (loss, ref)
    print("KERNEL_OK")
</pallas_src>

<mosaic_0001>
module attributes {stable_mosaic.version = 11 : i64} {
  func.func @_gc_pairs_kernel(%arg0: i32, %arg1: memref<6xi32, #tpu.memory_space<smem>>, %arg2: memref<1x16x128xf32, #tpu.memory_space<vmem>>, %arg3: memref<1x8x128xf32, #tpu.memory_space<vmem>>) attributes {dimension_semantics = [#tpu.dimension_semantics<parallel>], iteration_bounds = array<i64: 3>, scalar_prefetch = 1 : i64, scratch_operands = 0 : i64, tpu.core_type = #tpu.core_type<tc>, window_params = [{transform_indices = @transform_0, window_bounds = array<i64: 1, 16, 128>}, {transform_indices = @transform_1, window_bounds = array<i64: 1, 8, 128>}]} {
    %c2_i32 = arith.constant 2 : i32
    %0 = arith.muli %c2_i32, %arg0 : i32
    %1 = arith.index_cast %0 : i32 to index
    %2 = memref.load %arg1[%1] : memref<6xi32, #tpu.memory_space<smem>>
    %c2_i32_0 = arith.constant 2 : i32
    %3 = arith.muli %c2_i32_0, %arg0 : i32
    %c1_i32 = arith.constant 1 : i32
    %4 = arith.addi %3, %c1_i32 : i32
    %5 = arith.index_cast %4 : i32 to index
    %6 = memref.load %arg1[%5] : memref<6xi32, #tpu.memory_space<smem>>
    %7 = arith.addi %2, %6 : i32
    %8 = arith.minsi %2, %6 : i32
    %c0 = arith.constant 0 : index
    %c0_1 = arith.constant 0 : index
    %c0_2 = arith.constant 0 : index
    %9 = vector.load %arg2[%c0, %c0_1, %c0_2] : memref<1x16x128xf32, #tpu.memory_space<vmem>>, vector<1x16x128xf32>
    %10 = vector.shape_cast %9 : vector<1x16x128xf32> to vector<16x128xf32>
    %cst = arith.constant dense<0.000000e+00> : vector<16x16xf32>
    %11 = tpu.matmul %10, %10, %cst {dimension_numbers = #tpu.dot_dimension_numbers<[1], [1], [0], [0], [0, 0, 1, 0], [], []>} : vector<16x128xf32>, vector<16x128xf32>, vector<16x16xf32> -> vector<16x16xf32>
    %12 = tpu.iota {dimensions = array<i32: 0>} : vector<16x16xi32>
    %13 = tpu.iota {dimensions = array<i32: 1>} : vector<16x16xi32>
    %14 = tpu.iota {dimensions = array<i32: 0>} : vector<16x1xi32>
    %15 = arith.cmpi eq, %12, %13 : vector<16x16xi32>
    %16 = vector.broadcast %7 : i32 to vector<16x16xi32>
    %17 = arith.cmpi slt, %12, %16 : vector<16x16xi32>
    %18 = arith.andi %15, %17 : vector<16x16xi1>
    %19 = arith.extui %18 : vector<16x16xi1> to vector<16x16xi32>
    %20 = arith.sitofp %19 : vector<16x16xi32> to vector<16x16xf32>
    %21 = vector.broadcast %2 : i32 to vector<16x16xi32>
    %22 = arith.addi %12, %21 : vector<16x16xi32>
    %23 = arith.cmpi eq, %13, %22 : vector<16x16xi32>
    %24 = vector.broadcast %8 : i32 to vector<16x16xi32>
    %25 = arith.cmpi slt, %12, %24 : vector<16x16xi32>
    %26 = arith.andi %23, %25 : vector<16x16xi1>
    %27 = vector.broadcast %2 : i32 to vector<16x16xi32>
    %28 = arith.addi %13, %27 : vector<16x16xi32>
    %29 = arith.cmpi eq, %12, %28 : vector<16x16xi32>
    %30 = vector.broadcast %8 : i32 to vector<16x16xi32>
    %31 = arith.cmpi slt, %13, %30 : vector<16x16xi32>
    %32 = arith.andi %29, %31 : vector<16x16xi1>
    %33 = arith.ori %26, %32 : vector<16x16xi1>
    %34 = arith.extui %33 : vector<16x16xi1> to vector<16x16xi32>
    %35 = arith.sitofp %34 : vector<16x16xi32> to vector<16x16xf32>
    %36 = arith.addf %20, %35 : vector<16x16xf32>
    %37 = vector.broadcast %7 : i32 to vector<16x16xi32>
    %38 = arith.cmpi slt, %13, %37 : vector<16x16xi32>
    %39 = arith.extui %38 : vector<16x16xi1> to vector<16x16xi32>
    %40 = arith.sitofp %39 : vector<16x16xi32> to vector<16x16xf32>
    %41 = arith.mulf %20, %11 : vector<16x16xf32>
    %cst_3 = arith.constant dense<0.000000e+00> : vector<16xf32>
    %42 = vector.multi_reduction <add>, %41, %cst_3 [1] : vector<16x16xf32> to vector<16xf32>
    %43 = vector.shape_cast %42 : vector<16xf32> to vector<16x1xf32>
    %44 = arith.mulf %20, %11 : vector<16x16xf32>
    %cst_4 = arith.constant dense<0.000000e+00> : vector<16xf32>
    %45 = vector.multi_reduction <add>, %44, %cst_4 [0] : vector<16x16xf32> to vector<16xf32>
    %46 = vector.shape_cast %45 : vector<16xf32> to vector<1x16xf32>
    %cst_5 = arith.constant 9.99999996E-13 : f32
    %47 = vector.broadcast %cst_5 : f32 to vector<16x1xf32>
    %48 = arith.addf %43, %47 : vector<16x1xf32>
    %49 = math.rsqrt %48 : vector<16x1xf32>
    %cst_6 = arith.constant 9.99999996E-13 : f32
    %50 = vector.broadcast %cst_6 : f32 to vector<1x16xf32>
    %51 = arith.addf %46, %50 : vector<1x16xf32>
    %52 = math.rsqrt %51 : vector<1x16xf32>
    %cst_7 = arith.constant 1.000000e+00 : f32
    %53 = vector.broadcast %cst_7 : f32 to vector<16x1xf32>
    %54 = arith.mulf %49, %53 : vector<16x1xf32>
    %55 = vector.broadcast %54 : vector<16x1xf32> to vector<16x16xf32>
    %56 = arith.mulf %11, %55 : vector<16x16xf32>
    %57 = vector.broadcast %52 : vector<1x16xf32> to vector<16x16xf32>
    %58 = arith.mulf %56, %57 : vector<16x16xf32>
    %59 = math.exp %58 : vector<16x16xf32>
    %cst_8 = arith.constant 1.000000e+00 : f32
    %60 = vector.broadcast %cst_8 : f32 to vector<16x16xf32>
    %61 = arith.subf %60, %59 : vector<16x16xf32>
    %62 = arith.mulf %36, %61 : vector<16x16xf32>
    %63 = arith.addf %59, %62 : vector<16x16xf32>
    %64 = arith.mulf %40, %63 : vector<16x16xf32>
    %cst_9 = arith.constant dense<0.000000e+00> : vector<16xf32>
    %65 = vector.multi_reduction <add>, %64, %cst_9 [1] : vector<16x16xf32> to vector<16xf32>
    %66 = vector.shape_cast %65 : vector<16xf32> to vector<16x1xf32>
    %67 = arith.mulf %20, %58 : vector<16x16xf32>
    %cst_10 = arith.constant dense<0.000000e+00> : vector<16xf32>
    %68 = vector.multi_reduction <add>, %67, %cst_10 [1] : vector<16x16xf32> to vector<16xf32>
    %69 = vector.shape_cast %68 : vector<16xf32> to vector<16x1xf32>
    %70 = arith.mulf %20, %59 : vector<16x16xf32>
    %cst_11 = arith.constant dense<0.000000e+00> : vector<16xf32>
    %71 = vector.multi_reduction <add>, %70, %cst_11 [1] : vector<16x16xf32> to vector<16xf32>
    %72 = vector.shape_cast %71 : vector<16xf32> to vector<16x1xf32>
    %73 = arith.mulf %35, %58 : vector<16x16xf32>
    %cst_12 = arith.constant dense<0.000000e+00> : vector<16xf32>
    %74 = vector.multi_reduction <add>, %73, %cst_12 [1] : vector<16x16xf32> to vector<16xf32>
    %75 = vector.shape_cast %74 : vector<16xf32> to vector<16x1xf32>
    %76 = arith.mulf %35, %59 : vector<16x16xf32>
    %cst_13 = arith.constant dense<0.000000e+00> : vector<16xf32>
    %77 = vector.multi_reduction <add>, %76, %cst_13 [1] : vector<16x16xf32> to vector<16xf32>
    %78 = vector.shape_cast %77 : vector<16xf32> to vector<16x1xf32>
    %79 = vector.broadcast %7 : i32 to vector<16x1xi32>
    %80 = arith.cmpi slt, %14, %79 : vector<16x1xi32>
    %81 = arith.extui %80 : vector<16x1xi1> to vector<16x1xi32>
    %82 = arith.sitofp %81 : vector<16x1xi32> to vector<16x1xf32>
    %83 = vector.broadcast %8 : i32 to vector<16x1xi32>
    %84 = arith.cmpi slt, %14, %83 : vector<16x1xi32>
    %85 = vector.broadcast %2 : i32 to vector<16x1xi32>
    %86 = arith.cmpi sge, %14, %85 : vector<16x1xi32>
    %87 = arith.addi %2, %8 : i32
    %88 = vector.broadcast %87 : i32 to vector<16x1xi32>
    %89 = arith.cmpi slt, %14, %88 : vector<16x1xi32>
    %90 = arith.andi %86, %89 : vector<16x1xi1>
    %91 = arith.ori %84, %90 : vector<16x1xi1>
    %92 = arith.extui %91 : vector<16x1xi1> to vector<16x1xi32>
    %93 = arith.sitofp %92 : vector<16x1xi32> to vector<16x1xf32>
    %94 = arith.addf %72, %66 : vector<16x1xf32>
    %95 = math.log %94 : vector<16x1xf32>
    %96 = arith.subf %95, %69 : vector<16x1xf32>
    %97 = arith.mulf %82, %96 : vector<16x1xf32>
    %98 = arith.addf %78, %66 : vector<16x1xf32>
    %99 = math.log %98 : vector<16x1xf32>
    %100 = arith.subf %99, %75 : vector<16x1xf32>
    %101 = arith.mulf %93, %100 : vector<16x1xf32>
    %102 = arith.addf %97, %101 : vector<16x1xf32>
    %103 = vector.shape_cast %102 : vector<16x1xf32> to vector<1x16x1xf32>
    %cst_14 = arith.constant dense<0.000000e+00> : vector<1xf32>
    %104 = vector.multi_reduction <add>, %103, %cst_14 [1, 2] : vector<1x16x1xf32> to vector<1xf32>
    %105 = vector.shape_cast %104 : vector<1xf32> to vector<1x1x1xf32>
    %106 = vector.extract %105[0, 0, 0] : f32 from vector<1x1x1xf32>
    %c2_i32_15 = arith.constant 2 : i32
    %107 = arith.muli %c2_i32_15, %8 : i32
    %108 = arith.addi %7, %107 : i32
    %109 = arith.sitofp %108 : i32 to f32
    %110 = arith.divf %106, %109 : f32
    %111 = vector.broadcast %110 : f32 to vector<1x8x128xf32>
    %c0_16 = arith.constant 0 : index
    %c0_17 = arith.constant 0 : index
    %c0_18 = arith.constant 0 : index
    %112 = vector.load %arg3[%c0_16, %c0_17, %c0_18] : memref<1x8x128xf32, #tpu.memory_space<vmem>>, vector<1x8x128xf32>
    tpu.vector_store %arg3[%c0_16, %c0_17, %c0_18], %111 {strides = array<i32>} : memref<1x8x128xf32, #tpu.memory_space<vmem>>, vector<1x8x128xf32>,
    return
  }
  func.func @transform_0(%arg0: i32, %arg1: memref<6xi32, #tpu.memory_space<smem>>) -> (i32, i32, i32) {
    %c0_i32 = arith.constant 0 : i32
    %c0_i32_0 = arith.constant 0 : i32
    %c0_i32_1 = arith.constant 0 : i32
    return %arg0, %c0_i32, %c0_i32_0 : i32, i32, i32
  }
  func.func @transform_1(%arg0: i32, %arg1: memref<6xi32, #tpu.memory_space<smem>>) -> (i32, i32, i32) {
    %c0_i32 = arith.constant 0 : i32
    %c0_i32_0 = arith.constant 0 : i32
    %c0_i32_1 = arith.constant 0 : i32
    return %arg0, %c0_i32, %c0_i32_0 : i32, i32, i32
  }
}

</mosaic_0001>

<llo_original>
// kernel: tpu_custom_call.1
$region0: #{tpu_custom_call.1}
  #allocation0 [shape = 'u32[]', space=smem, size = 0x4, offset = 0x4, fixed_abs, tag = 'smem constant byte address 0x4 - core index']
  #allocation1 [shape = 'u32[144,128]{1,0:T(1,128)}', space=vmem, size = 0x12000, scoped, tag = 'internal scratch']
  #allocation2 [shape = 's32[1]{0}', space=sflag, size = 0x4, scoped, tag = 'scoped memory for tpu_custom_call.1']
  #allocation3 [shape = 'u8[512]{0}', space=smem, size = 0x200, scoped, tag = 'prefetched SMEM operand 0']
  %s0 = inlined_call_operand.hbm [shape: s32[6], index: 0, kind: input, shape index: {}]
  %s1 = inlined_call_operand.hbm [shape: f32[3,16,128], index: 1, kind: input, shape index: {}]
  %s2 = inlined_call_operand.hbm [shape: f32[3,8,128], index: 2, kind: output, shape index: {}]
  %s3 = sld [smem:[#allocation0]]
  $region41: #{tpu_custom_call.1} parent=0
    _
  %s5 = ssub.s32 1, %s3
  %s6 = scalar_select 0, %s5, %s3
  %8 = dma.hbm_to_smem %s0, 16, [#allocation3], [#allocation2]
  %9 = dma.done [#allocation2], 16
  %10 = sfence
  $region1: #{tpu_custom_call.1} parent=0
    #allocation4 [shape = 'u8[16384]{0}', space=vmem, size = 0x4000, scoped, tag = 'input window, operand 1']
    #allocation5 [shape = 's32[2]{0}', space=sflag, size = 0x8, scoped, tag = 'scoped memory for tpu_custom_call.1']
    #allocation6 [shape = 's32[2]{0}', space=sflag, size = 0x8, scoped, tag = 'scoped memory for tpu_custom_call.1']
    #allocation7 [shape = 'u8[8192]{0}', space=vmem, size = 0x2000, scoped, tag = 'output window, operand 0']
    %11 = vsyncpa [#allocation5], 0
    %s12 = scalar_lea.sflag [#allocation5], 1
    %13 = vsyncpa %s12, 0
    %14 = vsyncpa [#allocation6], 0
    %s15 = scalar_lea.sflag [#allocation6], 1
    %16 = vsyncpa %s15, 0
    loop: start=0, step=1, limit=5
    $region2: #{tpu_custom_call.1} parent=1 // loop_pre_header
      _
    $region3: #{tpu_custom_call.1} parent=1 // loop_header
      %s18 = sphi 0, %s22
      %p19 = scmp.ge.s32.totalorder %s18, 5
      %s28 = sphi 0, %s30
      %s31 = sphi 0, %s28
      %s32 = sphi 0, %s31
      %s48 = sphi 0, %s32
      %s54 = sphi 0, %s56
      %s57 = sphi 0, %s54
      %s58 = sphi 0, %s57
      %s74 = sphi 0, %s58
    $region4: #{tpu_custom_call.1} parent=1 // loop_header_branch
      %21 = sbr.rel (%p19) target = $region8
    $region5: #{tpu_custom_call.1} parent=1 // loop_body
      %s23 = ssub.s32 %s18, 1
      %s24 = ssub.s32 %s18, 2
      %s25 = sadd.s32 %s18, 1
      %s26 = ssub.s32 %s18, %s25
      %p27 = scmp.eq.s32.totalorder %s26, 0
      %s29 = sadd.s32 %s28, 1
      %s30 = scalar_select %p27, %s28, %s29
      %p33 = pneg %p27
      %p34 = scmp.eq.s32.totalorder %s18, 2
      %p35 = por %p33, %p34
      %p36 = scmp.ne.s32.totalorder %s28, %s31
      %p37 = scmp.eq.s32.totalorder %s18, 0
      %p38 = por %p36, %p37
      %p39 = scmp.ne.s32.totalorder %s28, %s31
      %p40 = scmp.eq.s32.totalorder %s23, 2
      %p41 = por %p39, %p40
      %p42 = scmp.ne.s32.totalorder %s31, %s32
      %p43 = scmp.eq.s32.totalorder %s23, 0
      %p44 = por %p42, %p43
      %p45 = scmp.ne.s32.totalorder %s31, %s32
      %p46 = scmp.eq.s32.totalorder %s24, 2
      %p47 = por %p45, %p46
      %p49 = scmp.ne.s32.totalorder %s32, %s48
      %p50 = scmp.eq.s32.totalorder %s24, 0
      %p51 = por %p49, %p50
      %s52 = ssub.s32 %s18, %s25
      %p53 = scmp.eq.s32.totalorder %s52, 0
      %s55 = sadd.s32 %s54, 1
      %s56 = scalar_select %p53, %s54, %s55
      %p59 = pneg %p53
      %p60 = scmp.eq.s32.totalorder %s18, 2
      %p61 = por %p59, %p60
      %p62 = scmp.ne.s32.totalorder %s54, %s57
      %p63 = scmp.eq.s32.totalorder %s18, 0
      %p64 = por %p62, %p63
      %p65 = scmp.ne.s32.totalorder %s54, %s57
      %p66 = scmp.eq.s32.totalorder %s23, 2
      %p67 = por %p65, %p66
      %p68 = scmp.ne.s32.totalorder %s57, %s58
      %p69 = scmp.eq.s32.totalorder %s23, 0
      %p70 = por %p68, %p69
      %p71 = scmp.ne.s32.totalorder %s57, %s58
      %p72 = scmp.eq.s32.totalorder %s24, 2
      %p73 = por %p71, %p72
      %p75 = scmp.ne.s32.totalorder %s58, %s74
      %p76 = scmp.eq.s32.totalorder %s24, 0
      %p77 = por %p75, %p76
      %p78 = scmp.le.s32.totalorder 1, %s18
      %p79 = scmp.lt.s32.totalorder %s18, 4
      %p80 = pnand %p78, %p79
      %p81 = pneg %p80
      // Predicated region
      $region9: #{tpu_custom_call.1} parent=5 // pred_check
        _
      $region10: #{tpu_custom_call.1} parent=5 // pred_check_branch
        %83 = sbr.rel (%p80) target = $region12
      $region11: #{tpu_custom_call.1} parent=5 // pred_region
        %s84 = ssub.s32 %s18, 1
      $region12: #{tpu_custom_call.1} parent=5 // pred_fallthru
        _
      %p85 = scmp.lt.s32.totalorder %s18, 3
      // Predicated region
      $region13: #{tpu_custom_call.1} parent=5 // pred_check
        %p86 = pneg %p85
      $region14: #{tpu_custom_call.1} parent=5 // pred_check_branch
        %88 = sbr.rel (%p86) target = $region16
      $region15: #{tpu_custom_call.1} parent=5 // pred_region
        // Predicated region
        $region17: #{tpu_custom_call.1} parent=15 // pred_check
          %p89 = pneg %p38
        $region18: #{tpu_custom_call.1} parent=15 // pred_check_branch
          %91 = sbr.rel (%p89) target = $region20
        $region19: #{tpu_custom_call.1} parent=15 // pred_region
          %s92 = sand.u32 %s28, 1
          %s93 = scalar_lea.sflag [#allocation5], %s92
          %s94 = sand.u32 %s28, 1
          %s95 = smul.addr %s94, 16
          %s96 = scalar_lea.vmem [#allocation4], %s95
          %s98 = ssub.s32 256, 256
          %99 = vsyncadd %s93, %s98
          %s100 = smul.addr %s18, 2
          %s101 = smul.addr %s100, 128
          %s102 = scalar_lea.hbm %s1, %s101
          %s103 = sshll.u32 %s96, 4
          %s104 = int_to_ptr.vmem [resolvable:$true] %s103
          %109 = dma.hbm_to_vmem [thread:$0]  %s102, 256, %s104, %s93, 128, 128, 8
        $region20: #{tpu_custom_call.1} parent=15 // pred_fallthru
          _
      $region16: #{tpu_custom_call.1} parent=5 // pred_fallthru
        _
      %p110 = scmp.le.s32.totalorder 1, %s18
      %p111 = scmp.lt.s32.totalorder %s18, 4
      %p112 = pnand %p110, %p111
      %p113 = pneg %p112
      // Predicated region
      $region21: #{tpu_custom_call.1} parent=5 // pred_check
        _
      $region22: #{tpu_custom_call.1} parent=5 // pred_check_branch
        %115 = sbr.rel (%p112) target = $region24
      $region23: #{tpu_custom_call.1} parent=5 // pred_region
        %s116 = ssub.s32 %s18, 1
        %s117 = sand.u32 %s31, 1
        %s118 = scalar_lea.sflag [#allocation5], %s117
        %s119 = sand.u32 %s31, 1
        %s120 = smul.addr %s119, 16
        %s121 = scalar_lea.vmem [#allocation4], %s120
        // Predicated region
        $region25: #{tpu_custom_call.1} parent=23 // pred_check
          %p122 = pneg %p44
        $region26: #{tpu_custom_call.1} parent=23 // pred_check_branch
          %124 = sbr.rel (%p122) target = $region28
        $region27: #{tpu_custom_call.1} parent=23 // pred_region
          %125 = dma.done %s118, 256
        $region28: #{tpu_custom_call.1} parent=23 // pred_fallthru
          _
        %s126 = sand.u32 %s31, 1
        %s127 = scalar_lea.sflag [#allocation5], %s126
        %s128 = sand.u32 %s31, 1
        %s129 = smul.addr %s128, 16
        %s130 = scalar_lea.vmem [#allocation4], %s129
        %p131 = pneg %p44
        %p132 = pneg %p41
        %p133 = pneg %p70
        %p134 = pneg %p67
        %s135 = sand.u32 %s57, 1
        %s136 = scalar_lea.sflag [#allocation6], %s135
        %s137 = sand.u32 %s57, 1
        %s138 = smul.addr %s137, 8
        %s139 = scalar_lea.vmem [#allocation7], %s138
        %s140 = smul.u32 %s23, 2
        %s141 = sld [smem:[#allocation3 + %s140]]
        %s142 = sadd.s32 %s140, 1
        %s143 = sld [smem:[#allocation3 + %s142]]
        %s144 = sadd.s32 %s141, %s143
        %p145 = scmp.lt.s32.totalorder %s141, %s143
        %s146 = scalar_select %p145, %s141, %s143
        %v147 = vld [vmem:[%s121] sm:$0xff]
        %v148 = vld [vmem:[%s121 + $0x8] sm:$0xff]
        %149 = vmatprep.subr.mxu0 0.0
        %150 = vmatpush1.xpose.msra.mxu0 0.0
        %151 = vmatprep.subr.mxu0 0.0
        %152 = vmatpush1.xpose.msra.mxu0 0.0
        %153 = vmatprep.subr.mxu0 0.0
        %154 = vmatpush1.xpose.msra.mxu0 0.0
        %155 = vmatprep.subr.mxu0 0.0
        %156 = vmatpush1.xpose.msra.mxu0 0.0
        %157 = vmatprep.subr.mxu0 0.0
        %158 = vmatpush1.xpose.msra.mxu0 0.0
        %159 = vmatprep.subr.mxu0 0.0
        %160 = vmatpush1.xpose.msra.mxu0 0.0
        %161 = vmatprep.subr.mxu0 0.0
        %162 = vmatpush1.xpose.msra.mxu0 0.0
        %163 = vmatprep.subr.mxu0 0.0
        %164 = vmatpush1.xpose.msra.mxu0 0.0
        %165 = vmatprep.subr.mxu0 0.0
        %166 = vmatpush1.xpose.msra.mxu0 0.0
        %167 = vmatprep.subr.mxu0 0.0
        %168 = vmatpush1.xpose.msra.mxu0 0.0
        %169 = vmatprep.subr.mxu0 0.0
        %170 = vmatpush1.xpose.msra.mxu0 0.0
        %171 = vmatprep.subr.mxu0 0.0
        %172 = vmatpush1.xpose.msra.mxu0 0.0
        %173 = vmatprep.subr.mxu0 0.0
        %174 = vmatpush1.xpose.msra.mxu0 0.0
        %175 = vmatprep.subr.mxu0 0.0
        %176 = vmatpush1.xpose.msra.mxu0 0.0
        %177 = vmatprep.subr.mxu0 0.0
        %178 = vmatpush1.xpose.msra.mxu0 %v148
        %179 = vmatprep.subr.mxu0 0.0
        %180 = vmatpush1.xpose.msra.mxu0 %v147
        %181 = vmatprep.subr.mxu0 0.0
        %182 = vmatpush2.xpose.msra.mxu0 0.0
        %183 = vmatprep.subr.mxu0 0.0
        %184 = vmatpush2.xpose.msra.mxu0 0.0
        %185 = vmatprep.subr.mxu0 0.0
        %186 = vmatpush2.xpose.msra.mxu0 0.0
        %187 = vmatprep.subr.mxu0 0.0
        %188 = vmatpush2.xpose.msra.mxu0 0.0
        %189 = vmatprep.subr.mxu0 0.0
        %190 = vmatpush2.xpose.msra.mxu0 0.0
        %191 = vmatprep.subr.mxu0 0.0
        %192 = vmatpush2.xpose.msra.mxu0 0.0
        %193 = vmatprep.subr.mxu0 0.0
        %194 = vmatpush2.xpose.msra.mxu0 0.0
        %195 = vmatprep.subr.mxu0 0.0
        %196 = vmatpush2.xpose.msra.mxu0 0.0
        %197 = vmatprep.subr.mxu0 0.0
        %198 = vmatpush2.xpose.msra.mxu0 0.0
        %199 = vmatprep.subr.mxu0 0.0
        %200 = vmatpush2.xpose.msra.mxu0 0.0
        %201 = vmatprep.subr.mxu0 0.0
        %202 = vmatpush2.xpose.msra.mxu0 0.0
        %203 = vmatprep.subr.mxu0 0.0
        %204 = vmatpush2.xpose.msra.mxu0 0.0
        %205 = vmatprep.subr.mxu0 0.0
        %206 = vmatpush2.xpose.msra.mxu0 0.0
        %207 = vmatprep.subr.mxu0 0.0
        %208 = vmatpush2.xpose.msra.mxu0 0.0
        %209 = vmatprep.subr.mxu0 0.0
        %210 = vmatpush2.xpose.msra.mxu0 0.0
        %211 = vmatprep.subr.mxu0 0.0
        %212 = vmatpush2.xpose.msra.mxu0 0.0
        %213 = vmatprep.mubr.f32.mxu0 0.0
        %214 = vmatmul.mubr.f32.gmra.mxu0 %v147
        %v215 = vpop.f32.mrf.mxu0
        %v216 = vadd.f32 0.0, %v215
        %v217 = vpop.f32.mrf.mxu0
        %218 = vmatprep.mubr.f32.mxu0 0.0
        %219 = vmatmul.mubr.f32.gmra.mxu0 %v148
        %v220 = vpop.f32.mrf.mxu0
        %v221 = vadd.f32 0.0, %v220
        %v222 = vpop.f32.mrf.mxu0
        %223 = vdwg.mxu0
        %v224 = vlaneseq
        %v225 = vshrl.u32 %v224, 7
        %v226 = vadd.s32 %v225, 8
        %v227 = vlaneseq
        %v228 = vand.u32 %v227, 127
        %vm229 = vcmp.eq.s32.totalorder %v225, %v228
        %vm230 = vcmp.eq.s32.totalorder %v226, %v228
        %v231 = vstv %s144
        %vm232 = vcmp.lt.s32.totalorder %v225, %v231
        %vm233 = vcmp.lt.s32.totalorder %v226, %v231
        %vm234 = vmand %vm229, %vm232
        %vm235 = vmand %vm230, %vm233
        %v236 = vsel %vm234, 1, 0
        %v237 = vsel %vm235, 1, 0
        %v238 = vcvt.s32.f32 %v236
        %v239 = vcvt.s32.f32 %v237
        %v240 = vstv %s141
        %v241 = vadd.s32 %v225, %v240
        %v242 = vadd.s32 %v226, %v240
        %vm243 = vcmp.eq.s32.totalorder %v228, %v241
        %vm244 = vcmp.eq.s32.totalorder %v228, %v242
        %v245 = vstv %s146
        %vm246 = vcmp.lt.s32.totalorder %v225, %v245
        %vm247 = vcmp.lt.s32.totalorder %v226, %v245
        %vm248 = vmand %vm243, %vm246
        %vm249 = vmand %vm244, %vm247
        %v250 = vadd.s32 %v228, %v240
        %vm251 = vcmp.eq.s32.totalorder %v225, %v250
        %vm252 = vcmp.eq.s32.totalorder %v226, %v250
        %vm253 = vcmp.lt.s32.totalorder %v228, %v245
        %vm254 = vmand %vm251, %vm253
        %vm255 = vmand %vm252, %vm253
        %vm256 = vmor %vm248, %vm254
        %vm257 = vmor %vm249, %vm255
        %v258 = vsel %vm256, 1, 0
        %v259 = vsel %vm257, 1, 0
        %v260 = vcvt.s32.f32 %v258
        %v261 = vcvt.s32.f32 %v259
        %v262 = vadd.f32 %v238, %v260
        %v263 = vadd.f32 %v239, %v261
        %vm264 = vcmp.lt.s32.totalorder %v228, %v231
        %v265 = vsel %vm264, 1, 0
        %v266 = vcvt.s32.f32 %v265
        %v267 = vmul.f32 %v238, %v216
        %v268 = vmul.f32 %v239, %v221
        %vm269 = vcmask 130048
        %v270 = vsel %vm269, %v267, 0.0
        %271 = vadd.xlane.f32.xlu0 %v270
        %v272 = vpop.xlane.xlu0 %271
        %v273 = vsel %vm269, %v268, 0.0
        %274 = vadd.xlane.f32.xlu0 %v273
        %v275 = vpop.xlane.xlu0 %274
        %v276 = vadd.f32 %v270, %v273
        %v277 = vrot.slane %v276, 4
        %v278 = vadd.f32 %v276, %v277
        %v279 = vrot.slane %v278, 2
        %v280 = vadd.f32 %v278, %v279
        %v281 = vrot.slane %v280, 1
        %v282 = vadd.f32 %v280, %v281
        %v283 = vadd.f32 %v272, 1e-12
        %v284 = vadd.f32 %v275, 1e-12
        %v285 = vrsqrt.pop %v283
        %v286 = vrsqrt.pop %v284
        %v287 = vadd.f32 %v282, 1e-12
        %v288 = vrsqrt.pop %v287
        %v289 = vmul.f32 %v216, %v285
        %v290 = vmul.f32 %v221, %v286
        %v291 = vmul.f32 %v289, %v288
        %v292 = vmul.f32 %v290, %v288
        %v293 = vmul.f32 %v291, 1.442695
        %v294 = vpow.pop %v293
        %v295 = vmul.f32 %v292, 1.442695
        %v296 = vpow.pop %v295
        %v297 = vsub.f32 1.0, %v294
        %v298 = vsub.f32 1.0, %v296
        %v299 = vmul.f32 %v262, %v297
        %v300 = vmul.f32 %v263, %v298
        %v301 = vadd.f32 %v294, %v299
        %v302 = vadd.f32 %v296, %v300
        %v303 = vmul.f32 %v266, %v301
        %v304 = vmul.f32 %v266, %v302
        %v305 = vsel %vm269, %v303, 0.0
        %306 = vadd.xlane.f32.xlu0 %v305
        %v307 = vpop.xlane.xlu0 %306
        %v308 = vsel %vm269, %v304, 0.0
        %309 = vadd.xlane.f32.xlu0 %v308
        %v310 = vpop.xlane.xlu0 %309
        %v311 = vmul.f32 %v238, %v291
        %v312 = vmul.f32 %v239, %v292
        %v313 = vsel %vm269, %v311, 0.0
        %314 = vadd.xlane.f32.xlu0 %v313
        %v315 = vpop.xlane.xlu0 %314
        %v316 = vsel %vm269, %v312, 0.0
        %317 = vadd.xlane.f32.xlu0 %v316
        %v318 = vpop.xlane.xlu0 %317
        %v319 = vmul.f32 %v238, %v294
        %v320 = vmul.f32 %v239, %v296
        %v321 = vsel %vm269, %v319, 0.0
        %322 = vadd.xlane.f32.xlu0 %v321
        %v323 = vpop.xlane.xlu0 %322
        %v324 = vsel %vm269, %v320, 0.0
        %325 = vadd.xlane.f32.xlu0 %v324
        %v326 = vpop.xlane.xlu0 %325
        %v327 = vmul.f32 %v260, %v291
        %v328 = vmul.f32 %v261, %v292
        %v329 = vsel %vm269, %v327, 0.0
        %330 = vadd.xlane.f32.xlu0 %v329
        %v331 = vpop.xlane.xlu0 %330
        %v332 = vsel %vm269, %v328, 0.0
        %333 = vadd.xlane.f32.xlu0 %v332
        %v334 = vpop.xlane.xlu0 %333
        %v335 = vmul.f32 %v260, %v294
        %v336 = vmul.f32 %v261, %v296
        %v337 = vsel %vm269, %v335, 0.0
        %338 = vadd.xlane.f32.xlu0 %v337
        %v339 = vpop.xlane.xlu0 %338
        %v340 = vsel %vm269, %v336, 0.0
        %341 = vadd.xlane.f32.xlu0 %v340
        %v342 = vpop.xlane.xlu0 %341
        %v343 = vsel %vm232, 1, 0
        %v344 = vsel %vm233, 1, 0
        %v345 = vcvt.s32.f32 %v343
        %v346 = vcvt.s32.f32 %v344
        %vm347 = vcmp.ge.s32.totalorder %v225, %v240
        %vm348 = vcmp.ge.s32.totalorder %v226, %v240
        %s349 = sadd.s32 %s141, %s146
        %v350 = vstv %s349
        %vm351 = vcmp.lt.s32.totalorder %v225, %v350
        %vm352 = vcmp.lt.s32.totalorder %v226, %v350
        %vm353 = vmand %vm347, %vm351
        %vm354 = vmand %vm348, %vm352
        %vm355 = vmor %vm246, %vm353
        %vm356 = vmor %vm247, %vm354
        %v357 = vsel %vm355, 1, 0
        %v358 = vsel %vm356, 1, 0
        %v359 = vcvt.s32.f32 %v357
        %v360 = vcvt.s32.f32 %v358
        %v361 = vadd.f32 %v323, %v307
        %v362 = vadd.f32 %v326, %v310
        %v363 = vlog2.pop %v361
        %v364 = vmul.f32 %v363, 0.6931472
        %v365 = vlog2.pop %v362
        %v366 = vmul.f32 %v365, 0.6931472
        %v367 = vsub.f32 %v364, %v315
        %v368 = vsub.f32 %v366, %v318
        %v369 = vmul.f32 %v345, %v367
        %v370 = vmul.f32 %v346, %v368
        %v371 = vadd.f32 %v339, %v307
        %v372 = vadd.f32 %v342, %v310
        %v373 = vlog2.pop %v371
        %v374 = vmul.f32 %v373, 0.6931472
        %v375 = vlog2.pop %v372
        %v376 = vmul.f32 %v375, 0.6931472
        %v377 = vsub.f32 %v374, %v331
        %v378 = vsub.f32 %v376, %v334
        %v379 = vmul.f32 %v359, %v377
        %v380 = vmul.f32 %v360, %v378
        %v381 = vadd.f32 %v369, %v379
        %v382 = vadd.f32 %v370, %v380
        %vm383 = vcmask 7168
        %v384 = vsel %vm383, %v381, 0.0
        %v385 = vsel %vm383, %v382, 0.0
        %v386 = vadd.f32 %v384, %v385
        %387 = vadd.xlane.f32.xlu0 %v386
        %v388 = vpop.xlane.xlu0 %387
        %v389 = vrot.slane %v388, 4
        %v390 = vadd.f32 %v388, %v389
        %v391 = vrot.slane %v390, 2
        %v392 = vadd.f32 %v390, %v391
        %v393 = vrot.slane %v392, 1
        %v394 = vadd.f32 %v392, %v393
        %s395 = vtos %v394
        %s396 = smul.u32 %s146, 2
        %s397 = sadd.s32 %s144, %s396
        %s398 = scvt.s32.f32 %s397
        %v399 = vstv %s398
        %v400 = vrcp.pop %v399
        %s401 = vtos %v400
        %s402 = smul.f32 %s395, %s401
        %v403 = vstv %s402
        %404 = vst [vmem:[%s139] sm:$0xff] %v403
        %s405 = sand.u32 %s57, 1
        %s406 = scalar_lea.sflag [#allocation6], %s405
        %s407 = sand.u32 %s57, 1
        %s408 = smul.addr %s407, 8
        %s409 = scalar_lea.vmem [#allocation7], %s408
        // Predicated region
        $region29: #{tpu_custom_call.1} parent=23 // pred_check
          %p410 = pneg %p67
        $region30: #{tpu_custom_call.1} parent=23 // pred_check_branch
          %412 = sbr.rel (%p410) target = $region32
        $region31: #{tpu_custom_call.1} parent=23 // pred_region
          %s414 = ssub.s32 128, 128
          %415 = vsyncadd %s406, %s414
          %s416 = smul.addr %s23, 128
          %s417 = scalar_lea.hbm %s2, %s416
          %s419 = sshll.u32 %s409, 4
          %s420 = int_to_ptr.vmem [resolvable:$true] %s419
          %422 = dma.vmem_to_hbm [thread:$0]  %s420, 128, %s417, %s406
        $region32: #{tpu_custom_call.1} parent=23 // pred_fallthru
          _
      $region24: #{tpu_custom_call.1} parent=5 // pred_fallthru
        _
      %p423 = scmp.le.s32.totalorder 2, %s18
      // Predicated region
      $region33: #{tpu_custom_call.1} parent=5 // pred_check
        %p424 = pneg %p423
      $region34: #{tpu_custom_call.1} parent=5 // pred_check_branch
        %426 = sbr.rel (%p424) target = $region36
      $region35: #{tpu_custom_call.1} parent=5 // pred_region
        %s427 = ssub.s32 %s18, 2
        // Predicated region
        $region37: #{tpu_custom_call.1} parent=35 // pred_check
          %p428 = pneg %p73
        $region38: #{tpu_custom_call.1} parent=35 // pred_check_branch
          %430 = sbr.rel (%p428) target = $region40
        $region39: #{tpu_custom_call.1} parent=35 // pred_region
          %s431 = sand.u32 %s58, 1
          %s432 = scalar_lea.sflag [#allocation6], %s431
          %s433 = sand.u32 %s58, 1
          %s434 = smul.addr %s433, 8
          %s435 = scalar_lea.vmem [#allocation7], %s434
          %436 = dma.done %s432, 128
        $region40: #{tpu_custom_call.1} parent=35 // pred_fallthru
          _
      $region36: #{tpu_custom_call.1} parent=5 // pred_fallthru
        _
    $region6: #{tpu_custom_call.1} parent=1 // loop_footer
      %s22 = sadd.s32 1, %s18
    $region7: #{tpu_custom_call.1} parent=1 // loop_footer_branch
      %17 = sbr.rel target = $region3
    $region8: #{tpu_custom_call.1} parent=1 // loop_exit
      _
    %437 = vsyncpa [#allocation5], 1
    %s438 = scalar_lea.sflag [#allocation5], 1
    %439 = vsyncpa %s438, 1
    %440 = vsyncpa [#allocation6], 1
    %s441 = scalar_lea.sflag [#allocation6], 1
    %442 = vsyncpa %s441, 1

</llo_original>
